<compile_context>
chip_gen: v7x
topology: tpu7x:2x2x1
jax: 0.10.0
libtpu: 0.0.40
codegen_flags: <defaults>
</compile_context>

<pallas_src>
import functools

import jax
import jax.numpy as jnp
from jax.experimental import pallas as pl
from jax.experimental.pallas import tpu as pltpu


LANE = 128


def _round_up(x, m):
    return (x + m - 1) // m * m


def _vmem_limit_bytes(requested):
    """Clamp a requested VMEM budget against the real device capacity.

    v5e/v6e have 128 MiB of physical VMEM, v7x only 64 MiB; leave ~25%
    headroom for the compiler's own scratch."""
    try:
        cap = int(pltpu.get_tpu_info().vmem_capacity_bytes)
    except Exception:          # query unavailable -> assume the smallest (v7x)
        cap = 64 << 20
    return max(4 << 20, min(int(requested), (cap * 3) // 4))


def _buffered_spec(block_shape, index_map, depth=3):
    """BlockSpec with a deeper prefetch pipeline when the knob is available."""
    try:
        return pl.BlockSpec(block_shape, index_map,
                            pipeline_mode=pl.Buffered(depth))
    except Exception:          # older jax without pipeline_mode / pl.Buffered
        return pl.BlockSpec(block_shape, index_map)


def _pick_tiles(n_pad):
    """Pick (tm, tk): row tile (multiple of 8, divides n_pad, >=2 row blocks
    when possible for v7x megacore) and reduction tile (multiple of 128,
    divides n_pad, <= 2048 to amortize per-step grid overhead)."""
    tk = LANE
    for cand in range(min(2048, n_pad), LANE - 1, -LANE):
        if n_pad % cand == 0:
            tk = cand
            break
    if n_pad <= LANE:
        return n_pad, tk
    tm = n_pad
    for cand in range(min(512, n_pad // 2), 7, -8):
        if n_pad % cand == 0:
            tm = cand
            break
    return tm, tk


# ---------------------------------------------------------------------------
# Pre-pass kernel: XW_scaled = (X @ W) * dinv[:, None]
# (feature transform hoisted out of the aggregation grid; column half of the
#  symmetric normalization folded in; bf16 operands, f32 accumulate.)
# ---------------------------------------------------------------------------
def _xw_scale_kernel(x_ref, w_ref, dinv_ref, o_ref):
    xw = jnp.dot(x_ref[...], w_ref[...], preferred_element_type=jnp.float32)
    o_ref[...] = (xw * dinv_ref[...]).astype(o_ref.dtype)


def _xw_scaled(x_bf16, w_bf16, dinv_col, *, tm):
    n_pad, f_in = x_bf16.shape
    h_pad = w_bf16.shape[1]
    return pl.pallas_call(
        _xw_scale_kernel,
        out_shape=jax.ShapeDtypeStruct((n_pad, h_pad), jnp.bfloat16),
        grid_spec=pltpu.PrefetchScalarGridSpec(
            num_scalar_prefetch=0,
            grid=(n_pad // tm,),
            in_specs=[
                pl.BlockSpec((tm, f_in), lambda i: (i, 0)),      # node block
                pl.BlockSpec((f_in, h_pad), lambda i: (0, 0)),   # W (resident)
                pl.BlockSpec((tm, 1), lambda i: (i, 0)),         # dinv (cols)
            ],
            out_specs=pl.BlockSpec((tm, h_pad), lambda i: (i, 0)),
        ),
        compiler_params=pltpu.CompilerParams(
            dimension_semantics=("parallel",)),
    )(x_bf16, w_bf16, dinv_col)


# ---------------------------------------------------------------------------
# Aggregation kernel: out = dinv_row * (A @ XW_scaled) + b   (optional ReLU)
# Grid = (row blocks, reduction blocks); raw bf16 adjacency feeds the MXU
# directly, f32 VMEM accumulator resident across the "arbitrary" axis.
# ---------------------------------------------------------------------------
def _aggregate_kernel(adj_ref, xw_ref, drow_ref, b_ref, o_ref, acc_ref, *,
                      apply_relu):
    k = pl.program_id(1)

    @pl.when(k == 0)
    def _():
        acc_ref[...] = jnp.zeros_like(acc_ref)

    # Pure MXU step: bf16 x bf16 -> f32 accumulate.  No per-step VPU work.
    acc_ref[...] += jnp.dot(adj_ref[...], xw_ref[...],
                            preferred_element_type=jnp.float32)

    @pl.when(k == pl.num_programs(1) - 1)
    def _():
        out = acc_ref[...] * drow_ref[...] + b_ref[...]   # f32 epilogue
        if apply_relu:
            out = jnp.maximum(out, 0.0)
        o_ref[...] = out.astype(o_ref.dtype)              # lane-dense store


def _aggregate(adj_bf16, xw_bf16, dinv_row, b_pad, *, apply_relu, tm, tk,
               out_dtype):
    n_pad = adj_bf16.shape[0]
    h_pad = xw_bf16.shape[1]
    grid = (n_pad // tm, n_pad // tk)
    o_isz = jnp.dtype(out_dtype).itemsize

    kernel = functools.partial(_aggregate_kernel, apply_relu=apply_relu)

    flops = 2 * n_pad * n_pad * h_pad
    bytes_accessed = (n_pad * n_pad * 2                  # adjacency stream
                      + grid[0] * n_pad * h_pad * 2      # XW per row block
                      + n_pad * h_pad * o_isz            # output
                      + n_pad * 4 + h_pad * 4)
    vmem_req = (3 * tm * tk * 2                          # 3-deep bf16 A tiles
                + 3 * tk * h_pad * 2                     # 3-deep bf16 XW tiles
                + 2 * tm * LANE * 4                      # dinv_row (lane pad)
                + 2 * 8 * h_pad * 4                      # bias
                + 2 * tm * h_pad * o_isz                 # output block
                + tm * h_pad * 4)                        # f32 accumulator
    vmem_limit = _vmem_limit_bytes(2 * vmem_req + (4 << 20))

    return pl.pallas_call(
        kernel,
        out_shape=jax.ShapeDtypeStruct((n_pad, h_pad), out_dtype),
        grid_spec=pltpu.PrefetchScalarGridSpec(
            num_scalar_prefetch=0,
            grid=grid,
            in_specs=[
                _buffered_spec((tm, tk), lambda i, k: (i, k)),     # raw A tile
                _buffered_spec((tk, h_pad), lambda i, k: (k, 0)),  # XW_scaled
                pl.BlockSpec((tm, 1), lambda i, k: (i, 0)),        # dinv rows
                pl.BlockSpec((1, h_pad), lambda i, k: (0, 0)),     # bias
            ],
            out_specs=pl.BlockSpec((tm, h_pad), lambda i, k: (i, 0)),
            scratch_shapes=[pltpu.VMEM((tm, h_pad), jnp.float32)],
        ),
        compiler_params=pltpu.CompilerParams(
            dimension_semantics=("parallel", "arbitrary"),
            vmem_limit_bytes=vmem_limit,
        ),
        cost_estimate=pl.CostEstimate(
            flops=flops, transcendentals=0, bytes_accessed=bytes_accessed),
    )(adj_bf16, xw_bf16, dinv_row, b_pad)


def flight_fare_gnn(x, edge_index, w1, b1, w2, b2):
    """out = A_hat @ relu(A_hat @ (x @ W1) + b1) @ W2 + b2  (2-layer GCN)."""
    n, f_in = x.shape
    h_dim = w1.shape[1]
    o_dim = w2.shape[1]

    # ---- padding / tiling ----
    n_pad = _round_up(n, LANE)
    if n_pad > 2048:
        n_pad = _round_up(n_pad, 512)   # guarantee a >=512 reduction tile
    tm, tk = _pick_tiles(n_pad)

    h_pad = _round_up(h_dim, LANE)      # lane-dense hidden / output widths
    o_pad = _round_up(o_dim, LANE)

    # ---- glue: raw adjacency (+ self loops) built directly in bf16 (0/1/2
    #      are exact); symmetric D^{-1/2} split between the XW pre-pass
    #      (columns) and the aggregation epilogue (rows) ----
    # TODO(synk): PyG add_remaining_self_loops / duplicate-edge semantics
    # differ slightly (duplicates collapse here; pre-existing self loops get
    # weight 2), matching the in-file dense reference.
    src, dst = edge_index[0], edge_index[1]
    adj = jnp.zeros((n_pad, n_pad), dtype=jnp.bfloat16)
    adj = adj.at[dst, src].set(1.0)                 # PyG: message src -> dst
    diag = jnp.arange(n_pad)
    adj = adj.at[diag, diag].add(1.0)               # self loops
    deg = jnp.sum(adj, axis=1, dtype=jnp.float32)
    dinv = jnp.where(deg > 0, jax.lax.rsqrt(deg), 0.0)
    dinv = dinv.reshape(n_pad, 1).astype(jnp.float32)

    x_pad = jnp.zeros((n_pad, f_in), jnp.bfloat16).at[:n, :].set(
        x.astype(jnp.bfloat16))
    w1_p = jnp.zeros((f_in, h_pad), jnp.bfloat16).at[:, :h_dim].set(
        w1.astype(jnp.bfloat16))
    b1_p = jnp.zeros((1, h_pad), jnp.float32).at[0, :h_dim].set(b1)
    w2_p = jnp.zeros((h_pad, o_pad), jnp.bfloat16).at[:h_dim, :o_dim].set(
        w2.astype(jnp.bfloat16))
    b2_p = jnp.zeros((1, o_pad), jnp.float32).at[0, :o_dim].set(b2)

    # ---- layer 1: h = relu(A_hat @ (x @ W1) + b1), kept lane-dense bf16 ----
    xw1 = _xw_scaled(x_pad, w1_p, dinv, tm=tm)
    h = _aggregate(adj, xw1, dinv, b1_p, apply_relu=True,
                   tm=tm, tk=tk, out_dtype=jnp.bfloat16)

    # ---- layer 2: out = A_hat @ (h @ W2) + b2 ----
    xw2 = _xw_scaled(h, w2_p, dinv, tm=tm)
    out = _aggregate(adj, xw2, dinv, b2_p, apply_relu=False,
                     tm=tm, tk=tk, out_dtype=jnp.float32)
    return out[:n, :o_dim]


def reference_forward(x, edge_index, w1, b1, w2, b2):
    """Pure-JAX f32 reference for correctness check."""
    n = x.shape[0]
    src, dst = edge_index[0], edge_index[1]
    adj = jnp.zeros((n, n), dtype=jnp.float32).at[dst, src].set(1.0)
    adj = adj + jnp.eye(n, dtype=jnp.float32)
    deg = jnp.sum(adj, axis=1)
    dinv = jnp.where(deg > 0, 1.0 / jnp.sqrt(deg), 0.0)
    a_hat = dinv[:, None] * adj * dinv[None, :]
    h = jax.nn.relu(a_hat @ (x @ w1) + b1)
    return a_hat @ (h @ w2) + b2


def _run_case(key, num_nodes, num_edges, input_dim, hidden_dim, output_dim):
    kx, ke, kw1, kw2 = jax.random.split(key, 4)
    x = jax.random.normal(kx, (num_nodes, input_dim), dtype=jnp.float32)
    edge_index = jax.random.randint(ke, (2, num_edges), 0, num_nodes,
                                    dtype=jnp.int32)
    w1 = jax.random.normal(kw1, (input_dim, hidden_dim), dtype=jnp.float32) * 0.1
    b1 = jnp.full((hidden_dim,), 0.05, dtype=jnp.float32)
    w2 = jax.random.normal(kw2, (hidden_dim, output_dim), dtype=jnp.float32) * 0.1
    b2 = jnp.full((output_dim,), -0.05, dtype=jnp.float32)

    out = jax.block_until_ready(flight_fare_gnn(x, edge_index, w1, b1, w2, b2))
    ref = reference_forward(x, edge_index, w1, b1, w2, b2)
    assert out.shape == (num_nodes, output_dim)
    # bf16 feature transform / activations -> relaxed tolerance vs f32 reference.
    err = float(jnp.max(jnp.abs(out - ref)))
    assert jnp.allclose(out, ref, atol=2e-2, rtol=2e-2), err


if __name__ == "__main__":
    key = jax.random.PRNGKey(0)
    k1, k2 = jax.random.split(key)
    # Toy graph matching the module's forward (single tile, 1x1 grid).
    _run_case(k1, num_nodes=16, num_edges=40,
              input_dim=8, hidden_dim=32, output_dim=8)
    # Larger graph exercising the (parallel rows x arbitrary reduction) grid
    # with >=2 row blocks (v7x two-TensorCore path).
    _run_case(k2, num_nodes=600, num_edges=2400,
              input_dim=8, hidden_dim=32, output_dim=8)
    print("KERNEL_OK")
</pallas_src>

<mosaic_0001>
module attributes {stable_mosaic.version = 11 : i64} {
  func.func @_xw_scale_kernel(%arg0: i32, %arg1: memref<128x8xbf16, #tpu.memory_space<vmem>>, %arg2: memref<8x128xbf16, #tpu.memory_space<vmem>>, %arg3: memref<128x1xf32, #tpu.memory_space<vmem>>, %arg4: memref<128x128xbf16, #tpu.memory_space<vmem>>) attributes {dimension_semantics = [#tpu.dimension_semantics<parallel>], iteration_bounds = array<i64: 1>, scalar_prefetch = 0 : i64, scratch_operands = 0 : i64, tpu.core_type = #tpu.core_type<tc>, window_params = [{transform_indices = @transform_0, window_bounds = array<i64: 128, 8>}, {pipeline_mode = #tpu.pipeline_mode<synchronous>, transform_indices = @transform_1, window_bounds = array<i64: 8, 128>}, {transform_indices = @transform_2, window_bounds = array<i64: 128, 1>}, {transform_indices = @transform_3, window_bounds = array<i64: 128, 128>}]} {
    %c0 = arith.constant 0 : index
    %c0_0 = arith.constant 0 : index
    %0 = vector.load %arg1[%c0, %c0_0] : memref<128x8xbf16, #tpu.memory_space<vmem>>, vector<128x8xbf16>
    %c0_1 = arith.constant 0 : index
    %c0_2 = arith.constant 0 : index
    %1 = vector.load %arg2[%c0_1, %c0_2] : memref<8x128xbf16, #tpu.memory_space<vmem>>, vector<8x128xbf16>
    %cst = arith.constant dense<0.000000e+00> : vector<128x128xf32>
    %2 = tpu.matmul %0, %1, %cst {dimension_numbers = #tpu.dot_dimension_numbers<[1], [0], [0], [1], [0, 0, 1, 1], [], []>} : vector<128x8xbf16>, vector<8x128xbf16>, vector<128x128xf32> -> vector<128x128xf32>
    %c0_3 = arith.constant 0 : index
    %c0_4 = arith.constant 0 : index
    %3 = vector.load %arg3[%c0_3, %c0_4] : memref<128x1xf32, #tpu.memory_space<vmem>>, vector<128x1xf32>
    %4 = vector.broadcast %3 : vector<128x1xf32> to vector<128x128xf32>
    %5 = arith.mulf %2, %4 : vector<128x128xf32>
    %6 = arith.truncf %5 : vector<128x128xf32> to vector<128x128xbf16>
    %c0_5 = arith.constant 0 : index
    %c0_6 = arith.constant 0 : index
    %7 = vector.load %arg4[%c0_5, %c0_6] : memref<128x128xbf16, #tpu.memory_space<vmem>>, vector<128x128xbf16>
    tpu.vector_store %arg4[%c0_5, %c0_6], %6 {strides = array<i32>} : memref<128x128xbf16, #tpu.memory_space<vmem>>, vector<128x128xbf16>,
    return
  }
  func.func @transform_0(%arg0: i32) -> (i32, i32) {
    %c0_i32 = arith.constant 0 : i32
    %c0_i32_0 = arith.constant 0 : i32
    return %arg0, %c0_i32 : i32, i32
  }
  func.func @transform_1(%arg0: i32) -> (i32, i32) {
    %c0_i32 = arith.constant 0 : i32
    %c0_i32_0 = arith.constant 0 : i32
    %c0_i32_1 = arith.constant 0 : i32
    return %c0_i32, %c0_i32_0 : i32, i32
  }
  func.func @transform_2(%arg0: i32) -> (i32, i32) {
    %c0_i32 = arith.constant 0 : i32
    %c0_i32_0 = arith.constant 0 : i32
    return %arg0, %c0_i32 : i32, i32
  }
  func.func @transform_3(%arg0: i32) -> (i32, i32) {
    %c0_i32 = arith.constant 0 : i32
    %c0_i32_0 = arith.constant 0 : i32
    return %arg0, %c0_i32 : i32, i32
  }
}

</mosaic_0001>

<llo_original>
// kernel: tpu_custom_call.1
$region0: #{tpu_custom_call.1}
  #allocation0 [shape = 'u32[]', space=smem, size = 0x4, offset = 0x4, fixed_abs, tag = 'smem constant byte address 0x4 - core index']
  #allocation1 [shape = 'u32[144,128]{1,0:T(1,128)}', space=vmem, size = 0x12000, scoped, tag = 'internal scratch']
  %s0 = inlined_call_operand.vmem [shape: bf16[128,8], index: 0, kind: input, shape index: {}]
  %s1 = inlined_call_operand.vmem [shape: bf16[8,128], index: 1, kind: input, shape index: {}]
  %s2 = inlined_call_operand.vmem [shape: f32[128,1], index: 2, kind: input, shape index: {}]
  %s3 = inlined_call_operand.hbm [shape: bf16[128,128], index: 3, kind: output, shape index: {}]
  %s4 = sld [smem:[#allocation0]]
  $region22: #{tpu_custom_call.1} parent=0
    _
  %s6 = ssub.s32 1, %s4
  %s7 = scalar_select 0, %s6, %s4
  $region1: #{tpu_custom_call.1} parent=0
    #allocation2 [shape = 'u8[32768]{0}', space=vmem, size = 0x8000, scoped, tag = 'output window, operand 0, single buffered']
    #allocation3 [shape = 's32[1]{0}', space=sflag, size = 0x4, scoped, tag = 'scoped memory for tpu_custom_call.1']
    %8 = vsyncpa [#allocation3], 0
    // Predicated region
    $region2: #{tpu_custom_call.1} parent=1 // pred_check
      _
    $region3: #{tpu_custom_call.1} parent=1 // pred_check_branch
      %10 = sbr.rel (0) target = $region5
    $region4: #{tpu_custom_call.1} parent=1 // pred_region
      _
    $region5: #{tpu_custom_call.1} parent=1 // pred_fallthru
      _
    // Predicated region
    $region6: #{tpu_custom_call.1} parent=1 // pred_check
      _
    $region7: #{tpu_custom_call.1} parent=1 // pred_check_branch
      %12 = sbr.rel (0) target = $region9
    $region8: #{tpu_custom_call.1} parent=1 // pred_region
      _
    $region9: #{tpu_custom_call.1} parent=1 // pred_fallthru
      _
    // Predicated region
    $region10: #{tpu_custom_call.1} parent=1 // pred_check
      _
    $region11: #{tpu_custom_call.1} parent=1 // pred_check_branch
      %14 = sbr.rel (0) target = $region13
    $region12: #{tpu_custom_call.1} parent=1 // pred_region
      _
    $region13: #{tpu_custom_call.1} parent=1 // pred_fallthru
      _
    %v16 = vld [vmem:[%s0] sm:$0xf]
    %v17 = vld [vmem:[%s0 + $0x4] sm:$0xf]
    %v18 = vld [vmem:[%s0 + $0x8] sm:$0xf]
    %v19 = vld [vmem:[%s0 + $0xc] sm:$0xf]
    %v20 = vld [vmem:[%s0 + $0x10] sm:$0xf]
    %v21 = vld [vmem:[%s0 + $0x14] sm:$0xf]
    %v22 = vld [vmem:[%s0 + $0x18] sm:$0xf]
    %v23 = vld [vmem:[%s0 + $0x1c] sm:$0xf]
    %v24 = vld [vmem:[%s0 + $0x20] sm:$0xf]
    %v25 = vld [vmem:[%s0 + $0x24] sm:$0xf]
    %v26 = vld [vmem:[%s0 + $0x28] sm:$0xf]
    %v27 = vld [vmem:[%s0 + $0x2c] sm:$0xf]
    %v28 = vld [vmem:[%s0 + $0x30] sm:$0xf]
    %v29 = vld [vmem:[%s0 + $0x34] sm:$0xf]
    %v30 = vld [vmem:[%s0 + $0x38] sm:$0xf]
    %v31 = vld [vmem:[%s0 + $0x3c] sm:$0xf]
    %v32 = vld [vmem:[%s1] sm:$0xf]
    %v49 = vunpack.c.l.b16 %v16
    %v50 = vunpack.c.l.b16 %v17
    %v51 = vunpack.c.l.b16 %v18
    %v52 = vunpack.c.l.b16 %v19
    %v53 = vunpack.c.l.b16 %v20
    %v54 = vunpack.c.l.b16 %v21
    %v55 = vunpack.c.l.b16 %v22
    %v56 = vunpack.c.l.b16 %v23
    %v57 = vunpack.c.l.b16 %v24
    %v58 = vunpack.c.l.b16 %v25
    %v59 = vunpack.c.l.b16 %v26
    %v60 = vunpack.c.l.b16 %v27
    %v61 = vunpack.c.l.b16 %v28
    %v62 = vunpack.c.l.b16 %v29
    %v63 = vunpack.c.l.b16 %v30
    %v64 = vunpack.c.l.b16 %v31
    %v65 = vpack.c.b16 %v50, %v49
    %v66 = vpack.c.b16 %v52, %v51
    %v67 = vpack.c.b16 %v54, %v53
    %v68 = vpack.c.b16 %v56, %v55
    %v69 = vpack.c.b16 %v58, %v57
    %v70 = vpack.c.b16 %v60, %v59
    %v71 = vpack.c.b16 %v62, %v61
    %v72 = vpack.c.b16 %v64, %v63
    %vm73 = vcmask 64512
    %v75 = vsel %vm73, %v65, 0
    %v78 = vsel %vm73, %v66, 0
    %v81 = vsel %vm73, %v67, 0
    %v84 = vsel %vm73, %v68, 0
    %v87 = vsel %vm73, %v69, 0
    %v90 = vsel %vm73, %v70, 0
    %v93 = vsel %vm73, %v71, 0
    %v96 = vsel %vm73, %v72, 0
    %vm98 = vcmask 1043456
    %v100 = vsel %vm98, %v32, 0
    %102 = vmatprep.subr.bf16.mxu0 0
    %103 = vmatpush1.bf16.msra.mxu0 %v100
    %104 = vmatprep.subr.bf16.mxu0 0
    %105 = vmatpush1.bf16.msra.mxu0 0
    %106 = vmatprep.subr.bf16.mxu0 0
    %107 = vmatpush1.bf16.msra.mxu0 0
    %108 = vmatprep.subr.bf16.mxu0 0
    %109 = vmatpush1.bf16.msra.mxu0 0
    %110 = vmatprep.subr.bf16.mxu0 0
    %111 = vmatpush1.bf16.msra.mxu0 0
    %112 = vmatprep.subr.bf16.mxu0 0
    %113 = vmatpush1.bf16.msra.mxu0 0
    %114 = vmatprep.subr.bf16.mxu0 0
    %115 = vmatpush1.bf16.msra.mxu0 0
    %116 = vmatprep.subr.bf16.mxu0 0
    %117 = vmatpush1.bf16.msra.mxu0 0
    %118 = vmatprep.subr.bf16.mxu0 0
    %119 = vmatpush1.bf16.msra.mxu0 0
    %120 = vmatprep.subr.bf16.mxu0 0
    %121 = vmatpush1.bf16.msra.mxu0 0
    %122 = vmatprep.subr.bf16.mxu0 0
    %123 = vmatpush1.bf16.msra.mxu0 0
    %124 = vmatprep.subr.bf16.mxu0 0
    %125 = vmatpush1.bf16.msra.mxu0 0
    %126 = vmatprep.subr.bf16.mxu0 0
    %127 = vmatpush1.bf16.msra.mxu0 0
    %128 = vmatprep.subr.bf16.mxu0 0
    %129 = vmatpush1.bf16.msra.mxu0 0
    %130 = vmatprep.subr.bf16.mxu0 0
    %131 = vmatpush1.bf16.msra.mxu0 0
    %132 = vmatprep.subr.bf16.mxu0 0
    %133 = vmatpush1.bf16.msra.mxu0 0
    %134 = vmatprep.mubr.bf16.mxu0 0
    %135 = vmatmul.mubr.bf16.gmra.mrb[0].mxu0 %v75
    %v136 = vpop.f32.mrb[0].mxu0
    %v137 = vadd.f32 0.0, %v136
    %v138 = vpop.f32.mrb[0].mxu0
    %v139 = vpop.f32.mrb[0].mxu0
    %v140 = vadd.f32 0.0, %v139
    %v141 = vpop.f32.mrb[0].mxu0
    %142 = vmatprep.mubr.bf16.mxu0 0
    %143 = vmatmul.mubr.bf16.gmra.mrb[0].mxu0 %v78
    %v144 = vpop.f32.mrb[0].mxu0
    %v145 = vadd.f32 0.0, %v144
    %v146 = vpop.f32.mrb[0].mxu0
    %v147 = vpop.f32.mrb[0].mxu0
    %v148 = vadd.f32 0.0, %v147
    %v149 = vpop.f32.mrb[0].mxu0
    %150 = vmatprep.mubr.bf16.mxu0 0
    %151 = vmatmul.mubr.bf16.gmra.mrb[0].mxu0 %v81
    %v152 = vpop.f32.mrb[0].mxu0
    %v153 = vadd.f32 0.0, %v152
    %v154 = vpop.f32.mrb[0].mxu0
    %v155 = vpop.f32.mrb[0].mxu0
    %v156 = vadd.f32 0.0, %v155
    %v157 = vpop.f32.mrb[0].mxu0
    %158 = vmatprep.mubr.bf16.mxu0 0
    %159 = vmatmul.mubr.bf16.gmra.mrb[0].mxu0 %v84
    %v160 = vpop.f32.mrb[0].mxu0
    %v161 = vadd.f32 0.0, %v160
    %v162 = vpop.f32.mrb[0].mxu0
    %v163 = vpop.f32.mrb[0].mxu0
    %v164 = vadd.f32 0.0, %v163
    %v165 = vpop.f32.mrb[0].mxu0
    %166 = vmatprep.mubr.bf16.mxu0 0
    %167 = vmatmul.mubr.bf16.gmra.mrb[0].mxu0 %v87
    %v168 = vpop.f32.mrb[0].mxu0
    %v169 = vadd.f32 0.0, %v168
    %v170 = vpop.f32.mrb[0].mxu0
    %v171 = vpop.f32.mrb[0].mxu0
    %v172 = vadd.f32 0.0, %v171
    %v173 = vpop.f32.mrb[0].mxu0
    %174 = vmatprep.mubr.bf16.mxu0 0
    %175 = vmatmul.mubr.bf16.gmra.mrb[0].mxu0 %v90
    %v176 = vpop.f32.mrb[0].mxu0
    %v177 = vadd.f32 0.0, %v176
    %v178 = vpop.f32.mrb[0].mxu0
    %v179 = vpop.f32.mrb[0].mxu0
    %v180 = vadd.f32 0.0, %v179
    %v181 = vpop.f32.mrb[0].mxu0
    %182 = vmatprep.mubr.bf16.mxu0 0
    %183 = vmatmul.mubr.bf16.gmra.mrb[0].mxu0 %v93
    %v184 = vpop.f32.mrb[0].mxu0
    %v185 = vadd.f32 0.0, %v184
    %v186 = vpop.f32.mrb[0].mxu0
    %v187 = vpop.f32.mrb[0].mxu0
    %v188 = vadd.f32 0.0, %v187
    %v189 = vpop.f32.mrb[0].mxu0
    %190 = vmatprep.mubr.bf16.mxu0 0
    %191 = vmatmul.mubr.bf16.gmra.mrb[0].mxu0 %v96
    %v192 = vpop.f32.mrb[0].mxu0
    %v193 = vadd.f32 0.0, %v192
    %v194 = vpop.f32.mrb[0].mxu0
    %v195 = vpop.f32.mrb[0].mxu0
    %v196 = vadd.f32 0.0, %v195
    %v197 = vpop.f32.mrb[0].mxu0
    %198 = vdwg.mxu0
    %v199 = vld [vmem:[%s2] sm:$0xff]
    %v200 = vld [vmem:[%s2 + $0x8] sm:$0xff]
    %v201 = vld [vmem:[%s2 + $0x10] sm:$0xff]
    %v202 = vld [vmem:[%s2 + $0x18] sm:$0xff]
    %v203 = vld [vmem:[%s2 + $0x20] sm:$0xff]
    %v204 = vld [vmem:[%s2 + $0x28] sm:$0xff]
    %v205 = vld [vmem:[%s2 + $0x30] sm:$0xff]
    %v206 = vld [vmem:[%s2 + $0x38] sm:$0xff]
    %v207 = vld [vmem:[%s2 + $0x40] sm:$0xff]
    %v208 = vld [vmem:[%s2 + $0x48] sm:$0xff]
    %v209 = vld [vmem:[%s2 + $0x50] sm:$0xff]
    %v210 = vld [vmem:[%s2 + $0x58] sm:$0xff]
    %v211 = vld [vmem:[%s2 + $0x60] sm:$0xff]
    %v212 = vld [vmem:[%s2 + $0x68] sm:$0xff]
    %v213 = vld [vmem:[%s2 + $0x70] sm:$0xff]
    %v214 = vld [vmem:[%s2 + $0x78] sm:$0xff]
    %216 = vset.pattern.permute.xlu0 0
    %217 = vperm.xlu0 %216, %v199
    %v218 = vpop.permute.xlu0 %217
    %221 = vset.pattern.permute.xlu0 0
    %222 = vperm.xlu0 %221, %v200
    %v223 = vpop.permute.xlu0 %222
    %226 = vset.pattern.permute.xlu0 0
    %227 = vperm.xlu0 %226, %v201
    %v228 = vpop.permute.xlu0 %227
    %231 = vset.pattern.permute.xlu0 0
    %232 = vperm.xlu0 %231, %v202
    %v233 = vpop.permute.xlu0 %232
    %236 = vset.pattern.permute.xlu0 0
    %237 = vperm.xlu0 %236, %v203
    %v238 = vpop.permute.xlu0 %237
    %241 = vset.pattern.permute.xlu0 0
    %242 = vperm.xlu0 %241, %v204
    %v243 = vpop.permute.xlu0 %242
    %246 = vset.pattern.permute.xlu0 0
    %247 = vperm.xlu0 %246, %v205
    %v248 = vpop.permute.xlu0 %247
    %251 = vset.pattern.permute.xlu0 0
    %252 = vperm.xlu0 %251, %v206
    %v253 = vpop.permute.xlu0 %252
    %256 = vset.pattern.permute.xlu0 0
    %257 = vperm.xlu0 %256, %v207
    %v258 = vpop.permute.xlu0 %257
    %261 = vset.pattern.permute.xlu0 0
    %262 = vperm.xlu0 %261, %v208
    %v263 = vpop.permute.xlu0 %262
    %266 = vset.pattern.permute.xlu0 0
    %267 = vperm.xlu0 %266, %v209
    %v268 = vpop.permute.xlu0 %267
    %271 = vset.pattern.permute.xlu0 0
    %272 = vperm.xlu0 %271, %v210
    %v273 = vpop.permute.xlu0 %272
    %276 = vset.pattern.permute.xlu0 0
    %277 = vperm.xlu0 %276, %v211
    %v278 = vpop.permute.xlu0 %277
    %281 = vset.pattern.permute.xlu0 0
    %282 = vperm.xlu0 %281, %v212
    %v283 = vpop.permute.xlu0 %282
    %286 = vset.pattern.permute.xlu0 0
    %287 = vperm.xlu0 %286, %v213
    %v288 = vpop.permute.xlu0 %287
    %291 = vset.pattern.permute.xlu0 0
    %292 = vperm.xlu0 %291, %v214
    %v293 = vpop.permute.xlu0 %292
    %v295 = vmul.f32 %v137, %v218
    %v296 = vmul.f32 %v140, %v223
    %v297 = vmul.f32 %v145, %v228
    %v298 = vmul.f32 %v148, %v233
    %v299 = vmul.f32 %v153, %v238
    %v300 = vmul.f32 %v156, %v243
    %v301 = vmul.f32 %v161, %v248
    %v302 = vmul.f32 %v164, %v253
    %v303 = vmul.f32 %v169, %v258
    %v304 = vmul.f32 %v172, %v263
    %v305 = vmul.f32 %v177, %v268
    %v306 = vmul.f32 %v180, %v273
    %v307 = vmul.f32 %v185, %v278
    %v308 = vmul.f32 %v188, %v283
    %v309 = vmul.f32 %v193, %v288
    %v310 = vmul.f32 %v196, %v293
    %v311 = vpack.c.bf16 %v296, %v295
    %v312 = vpack.c.bf16 %v298, %v297
    %v313 = vpack.c.bf16 %v300, %v299
    %v314 = vpack.c.bf16 %v302, %v301
    %v315 = vpack.c.bf16 %v304, %v303
    %v316 = vpack.c.bf16 %v306, %v305
    %v317 = vpack.c.bf16 %v308, %v307
    %v318 = vpack.c.bf16 %v310, %v309
    %v327 = vunpack.c.l.b16 %v311
    %v328 = vunpack.c.h.b16 %v311
    %v329 = vunpack.c.l.b16 %v312
    %v330 = vunpack.c.h.b16 %v312
    %v331 = vunpack.c.l.b16 %v313
    %v332 = vunpack.c.h.b16 %v313
    %v333 = vunpack.c.l.b16 %v314
    %v334 = vunpack.c.h.b16 %v314
    %v335 = vunpack.c.l.b16 %v315
    %v336 = vunpack.c.h.b16 %v315
    %v337 = vunpack.c.l.b16 %v316
    %v338 = vunpack.c.h.b16 %v316
    %v339 = vunpack.c.l.b16 %v317
    %v340 = vunpack.c.h.b16 %v317
    %v341 = vunpack.c.l.b16 %v318
    %v342 = vunpack.c.h.b16 %v318
    %v343 = vpack.c.b16 %v327, %v327
    %v344 = vpack.c.b16 %v328, %v328
    %v345 = vpack.c.b16 %v329, %v329
    %v346 = vpack.c.b16 %v330, %v330
    %v347 = vpack.c.b16 %v331, %v331
    %v348 = vpack.c.b16 %v332, %v332
    %v349 = vpack.c.b16 %v333, %v333
    %v350 = vpack.c.b16 %v334, %v334
    %v351 = vpack.c.b16 %v335, %v335
    %v352 = vpack.c.b16 %v336, %v336
    %v353 = vpack.c.b16 %v337, %v337
    %v354 = vpack.c.b16 %v338, %v338
    %v355 = vpack.c.b16 %v339, %v339
    %v356 = vpack.c.b16 %v340, %v340
    %v357 = vpack.c.b16 %v341, %v341
    %v358 = vpack.c.b16 %v342, %v342
    %375 = vst [vmem:[#allocation2] sm:$0xf] %v343
    %376 = vst [vmem:[#allocation2 + $0x4] sm:$0xf] %v344
    %377 = vst [vmem:[#allocation2 + $0x8] sm:$0xf] %v345
    %378 = vst [vmem:[#allocation2 + $0xc] sm:$0xf] %v346
    %379 = vst [vmem:[#allocation2 + $0x10] sm:$0xf] %v347
    %380 = vst [vmem:[#allocation2 + $0x14] sm:$0xf] %v348
    %381 = vst [vmem:[#allocation2 + $0x18] sm:$0xf] %v349
    %382 = vst [vmem:[#allocation2 + $0x1c] sm:$0xf] %v350
    %383 = vst [vmem:[#allocation2 + $0x20] sm:$0xf] %v351
    %384 = vst [vmem:[#allocation2 + $0x24] sm:$0xf] %v352
    %385 = vst [vmem:[#allocation2 + $0x28] sm:$0xf] %v353
    %386 = vst [vmem:[#allocation2 + $0x2c] sm:$0xf] %v354
    %387 = vst [vmem:[#allocation2 + $0x30] sm:$0xf] %v355
    %388 = vst [vmem:[#allocation2 + $0x34] sm:$0xf] %v356
    %389 = vst [vmem:[#allocation2 + $0x38] sm:$0xf] %v357
    %390 = vst [vmem:[#allocation2 + $0x3c] sm:$0xf] %v358
    // Predicated region
    $region14: #{tpu_custom_call.1} parent=1 // pred_check
      _
    $region15: #{tpu_custom_call.1} parent=1 // pred_check_branch
      %392 = sbr.rel (0) target = $region17
    $region16: #{tpu_custom_call.1} parent=1 // pred_region
      %s394 = ssub.s32 1024, 1024
      %395 = vsyncadd [#allocation3], %s394
      %s396 = sshll.u32 [#allocation2], 4
      %s397 = int_to_ptr.vmem [resolvable:$true] %s396
      %402 = dma.vmem_to_hbm [thread:$0]  %s397, 1024, %s3, [#allocation3], 64, 64, 4
    $region17: #{tpu_custom_call.1} parent=1 // pred_fallthru
      _
    // Predicated region
    $region18: #{tpu_custom_call.1} parent=1 // pred_check
      _
    $region19: #{tpu_custom_call.1} parent=1 // pred_check_branch
      %404 = sbr.rel (0) target = $region21
    $region20: #{tpu_custom_call.1} parent=1 // pred_region
      %405 = dma.done [#allocation3], 1024
    $region21: #{tpu_custom_call.1} parent=1 // pred_fallthru
      _
    %406 = vsyncpa [#allocation3], 1

</llo_original>
